<compile_context>
chip_gen: v7x
topology: tpu7x:2x2x1
jax: 0.10.0
libtpu: 0.0.40
codegen_flags: <defaults>
</compile_context>

<pallas_src>
import functools

import numpy as np
import jax
import jax.numpy as jnp
from jax.experimental import pallas as pl
from jax.experimental.pallas import tpu as pltpu

_HALF_LOG_2PI = 0.5 * float(np.log(2.0 * np.pi))


def _gauss_logpdf(x, mu, s):
    # Matches the PyTorch gauss_logpdf: -0.5*z^2 - 0.5*log(2*pi) (no -log(s)).
    z = (x - mu) / s
    return -0.5 * z * z - _HALF_LOG_2PI


# --------------------------------------------------------------------------
# Pallas kernel (hot path): out = X_tile @ W + b on the MXU.
# --------------------------------------------------------------------------
def _bnn_matmul_kernel(x_ref, w_ref, b_ref, out_ref):
    out_ref[...] = (
        jnp.dot(x_ref[...], w_ref[...], preferred_element_type=jnp.float32)
        + b_ref[...]
    ).astype(out_ref.dtype)


def _vmem_capacity_bytes():
    """Physical VMEM of the current generation; conservative 64 MiB fallback."""
    try:
        cap = getattr(pltpu.get_tpu_info(), "vmem_capacity_bytes", None)
        if cap:
            return int(cap)
    except Exception:
        pass
    return 64 * 1024 * 1024  # v7x has the smallest VMEM -> safe everywhere


def _choose_tile_n(n, d, x_itemsize, vmem_cap):
    """Row-tile size chosen by BYTES (lane padding included), no row cap.

    Per row of one grid step (both blocks double-buffered by the pipeline):
      X block  : ceil(d/128)*128 lanes * itemsize
      out block: 2 -> 128 padded lanes * 4 B (f32)
    Budget ~ half of physical VMEM for pipeline buffers, leaving headroom for
    resident W/b blocks and compiler internal scratch.
    """
    lanes_x = -(-d // 128) * 128
    bytes_per_row = 2 * (lanes_x * x_itemsize + 128 * 4)  # x2 double buffering
    budget = vmem_cap // 2
    rows = max(budget // bytes_per_row, 8)  # degenerate huge-D case: clamp to 8
    tile_n = (rows // 8) * 8
    n_pad8 = -(-n // 8) * 8
    return max(8, min(tile_n, n_pad8))


def bnn_forward(x, w_mu, w_log_s, b_mu, b_log_s, eps_w, eps_b,
                prior_mu=0.0, prior_s=0.01, tile_n=None, stream_bf16=False):
    """Returns (output (N,2), log_prior (1,2), log_post_est (1,2))."""
    n, d = x.shape
    assert w_mu.shape == (d, 2) and b_mu.shape == (1, 2)

    # ---- Parameter-only reparameterization + aux quantities (plain JAX;
    #      tiny (D,2)/(1,2) elementwise work, fused for free by XLA). ----
    w_sigma = jnp.exp(w_log_s)
    b_sigma = jnp.exp(b_log_s)
    w = w_mu + eps_w * w_sigma          # (D, 2)
    b = b_mu + eps_b * b_sigma          # (1, 2)
    log_prior = (_gauss_logpdf(w, prior_mu, prior_s).sum(axis=0, keepdims=True)
                 + _gauss_logpdf(b, prior_mu, prior_s).sum(axis=0, keepdims=True))
    log_post = (_gauss_logpdf(w, w_mu, w_sigma).sum(axis=0, keepdims=True)
                + _gauss_logpdf(b, b_mu, b_sigma).sum(axis=0, keepdims=True))

    # ---- Hot path: streamed X @ W + b (HBM-bandwidth bound, ~1 FLOP/byte).
    #      Optionally stream X/W as bf16 with f32 accumulation. ----
    x_in = x.astype(jnp.bfloat16) if stream_bf16 else x
    w_in = w.astype(jnp.bfloat16) if stream_bf16 else w

    vmem_cap = _vmem_capacity_bytes()
    if tile_n is None:
        tile_n = _choose_tile_n(n, d, x_in.dtype.itemsize, vmem_cap)
    assert tile_n % 8 == 0 and tile_n > 0
    num_tiles = pl.cdiv(n, tile_n)
    # No jnp.pad of X: Pallas masks the ragged final output block; the
    # corresponding OOB input rows read unspecified data, which is safe here
    # because there is no cross-row reduction and those rows are never written.

    flops = 2 * n * d * 2
    bytes_accessed = (n * d * x_in.dtype.itemsize + n * 2 * 4
                      + d * 2 * w_in.dtype.itemsize + 2 * 4)

    out = pl.pallas_call(
        _bnn_matmul_kernel,
        out_shape=jax.ShapeDtypeStruct((n, 2), jnp.float32),
        grid=(num_tiles,),
        in_specs=[
            pl.BlockSpec((tile_n, d), lambda i: (i, 0)),   # streamed X row tile
            pl.BlockSpec((d, 2), lambda i: (0, 0)),        # W (VMEM-resident)
            pl.BlockSpec((1, 2), lambda i: (0, 0)),        # b (VMEM-resident)
        ],
        out_specs=pl.BlockSpec((tile_n, 2), lambda i: (i, 0)),
        compiler_params=pltpu.CompilerParams(
            dimension_semantics=("parallel",),             # megacore row split
            vmem_limit_bytes=(vmem_cap * 5) // 8,          # ~40 MiB v7x / ~80 MiB v5e,v6e
        ),
        cost_estimate=pl.CostEstimate(
            flops=flops, transcendentals=0, bytes_accessed=bytes_accessed),
    )(x_in, w_in, b)

    # TODO(synk): for D << 128 on v7x, row-pack X into lane-dense (N*D/128, 128)
    # tiles with a block-diagonal W to widen the 2-lane output stores (needs
    # N % (128/D) tail handling); skipped here — test shapes stay HBM-bound.
    return out, log_prior, log_post


# --------------------------------------------------------------------------
# Pure-JAX reference (mirrors the PyTorch module exactly).
# --------------------------------------------------------------------------
def _reference(x, w_mu, w_log_s, b_mu, b_log_s, eps_w, eps_b,
               prior_mu=0.0, prior_s=0.01):
    w = w_mu + eps_w * jnp.exp(w_log_s)
    b = b_mu + eps_b * jnp.exp(b_log_s)
    out = x @ w + b
    lp = (_gauss_logpdf(w, prior_mu, prior_s).sum(axis=0, keepdims=True)
          + _gauss_logpdf(b, prior_mu, prior_s).sum(axis=0, keepdims=True))
    lq = (_gauss_logpdf(w, w_mu, jnp.exp(w_log_s)).sum(axis=0, keepdims=True)
          + _gauss_logpdf(b, b_mu, jnp.exp(b_log_s)).sum(axis=0, keepdims=True))
    return out, lp, lq


def _run_case(key, n, d, tile_n=None, stream_bf16=False, out_tol=1e-5):
    keys = jax.random.split(key, 7)
    x = jax.random.normal(keys[0], (n, d), dtype=jnp.float32)
    # Deterministic "parameter init" mirroring nn.Parameter(...).normal_(0, 0.1):
    # columns: 0 = mu-head BNNLayer(D,1), 1 = log_s-head BNNLayer(D,1).
    w_mu = 0.1 * jax.random.normal(keys[1], (d, 2), dtype=jnp.float32)
    w_log_s = 0.1 * jax.random.normal(keys[2], (d, 2), dtype=jnp.float32)
    b_mu = 0.1 * jax.random.normal(keys[3], (1, 2), dtype=jnp.float32)
    b_log_s = 0.1 * jax.random.normal(keys[4], (1, 2), dtype=jnp.float32)
    # Reparameterization noise (torch .normal_(0, 1)), fixed for determinism.
    eps_w = jax.random.normal(keys[5], (d, 2), dtype=jnp.float32)
    eps_b = jax.random.normal(keys[6], (1, 2), dtype=jnp.float32)

    fwd = jax.jit(functools.partial(bnn_forward, tile_n=tile_n,
                                    stream_bf16=stream_bf16))
    out, lp, lq = fwd(x, w_mu, w_log_s, b_mu, b_log_s, eps_w, eps_b)
    jax.block_until_ready((out, lp, lq))

    ref_out, ref_lp, ref_lq = _reference(
        x, w_mu, w_log_s, b_mu, b_log_s, eps_w, eps_b)
    np.testing.assert_allclose(np.asarray(out), np.asarray(ref_out),
                               rtol=out_tol, atol=out_tol)
    np.testing.assert_allclose(np.asarray(lp), np.asarray(ref_lp),
                               rtol=1e-4, atol=1e-3)
    np.testing.assert_allclose(np.asarray(lq), np.asarray(ref_lq),
                               rtol=1e-4, atol=1e-3)


if __name__ == "__main__":
    key = jax.random.PRNGKey(0)
    k1, k2, k3 = jax.random.split(key, 3)

    # Toy size matching the module (single grid step, auto tile).
    _run_case(k1, n=8, d=32)

    # Non-tile-aligned batch: multi-step pipelined grid, ragged final block
    # handled by Pallas (no jnp.pad copy of X), megacore-parallel row axis.
    _run_case(k2, n=250, d=32, tile_n=128)

    # Optional bf16 streaming path (halves HBM traffic; f32 accumulate).
    _run_case(k3, n=250, d=32, stream_bf16=True, out_tol=5e-2)

    print("KERNEL_OK")
</pallas_src>

<mosaic_0001>
module attributes {stable_mosaic.version = 11 : i64} {
  func.func @_bnn_matmul_kernel(%arg0: i32, %arg1: memref<8x32xf32, #tpu.memory_space<vmem>>, %arg2: memref<32x2xf32, #tpu.memory_space<vmem>>, %arg3: memref<1x2xf32, #tpu.memory_space<vmem>>, %arg4: memref<8x2xf32, #tpu.memory_space<vmem>>) attributes {dimension_semantics = [#tpu.dimension_semantics<parallel>], iteration_bounds = array<i64: 1>, scalar_prefetch = 0 : i64, scratch_operands = 0 : i64, tpu.core_type = #tpu.core_type<tc>, window_params = [{transform_indices = @transform_0, window_bounds = array<i64: 8, 32>}, {pipeline_mode = #tpu.pipeline_mode<synchronous>, transform_indices = @transform_1, window_bounds = array<i64: 32, 2>}, {pipeline_mode = #tpu.pipeline_mode<synchronous>, transform_indices = @transform_2, window_bounds = array<i64: 1, 2>}, {transform_indices = @transform_3, window_bounds = array<i64: 8, 2>}]} {
    %c0 = arith.constant 0 : index
    %c0_0 = arith.constant 0 : index
    %0 = vector.load %arg1[%c0, %c0_0] : memref<8x32xf32, #tpu.memory_space<vmem>>, vector<8x32xf32>
    %c0_1 = arith.constant 0 : index
    %c0_2 = arith.constant 0 : index
    %1 = vector.load %arg2[%c0_1, %c0_2] : memref<32x2xf32, #tpu.memory_space<vmem>>, vector<32x2xf32>
    %cst = arith.constant dense<0.000000e+00> : vector<8x2xf32>
    %2 = tpu.matmul %0, %1, %cst {dimension_numbers = #tpu.dot_dimension_numbers<[1], [0], [0], [1], [0, 0, 1, 1], [], []>} : vector<8x32xf32>, vector<32x2xf32>, vector<8x2xf32> -> vector<8x2xf32>
    %c0_3 = arith.constant 0 : index
    %c0_4 = arith.constant 0 : index
    %3 = vector.load %arg3[%c0_3, %c0_4] : memref<1x2xf32, #tpu.memory_space<vmem>>, vector<1x2xf32>
    %4 = vector.broadcast %3 : vector<1x2xf32> to vector<8x2xf32>
    %5 = arith.addf %2, %4 : vector<8x2xf32>
    %c0_5 = arith.constant 0 : index
    %c0_6 = arith.constant 0 : index
    %6 = vector.load %arg4[%c0_5, %c0_6] : memref<8x2xf32, #tpu.memory_space<vmem>>, vector<8x2xf32>
    tpu.vector_store %arg4[%c0_5, %c0_6], %5 {strides = array<i32>} : memref<8x2xf32, #tpu.memory_space<vmem>>, vector<8x2xf32>,
    return
  }
  func.func @transform_0(%arg0: i32) -> (i32, i32) {
    %c0_i32 = arith.constant 0 : i32
    %c0_i32_0 = arith.constant 0 : i32
    return %arg0, %c0_i32 : i32, i32
  }
  func.func @transform_1(%arg0: i32) -> (i32, i32) {
    %c0_i32 = arith.constant 0 : i32
    %c0_i32_0 = arith.constant 0 : i32
    %c0_i32_1 = arith.constant 0 : i32
    return %c0_i32, %c0_i32_0 : i32, i32
  }
  func.func @transform_2(%arg0: i32) -> (i32, i32) {
    %c0_i32 = arith.constant 0 : i32
    %c0_i32_0 = arith.constant 0 : i32
    %c0_i32_1 = arith.constant 0 : i32
    return %c0_i32, %c0_i32_0 : i32, i32
  }
  func.func @transform_3(%arg0: i32) -> (i32, i32) {
    %c0_i32 = arith.constant 0 : i32
    %c0_i32_0 = arith.constant 0 : i32
    return %arg0, %c0_i32 : i32, i32
  }
}

</mosaic_0001>

<llo_original>
// kernel: bnn_forward.1
$region0: #{bnn_forward.1}
  #allocation0 [shape = 'u32[]', space=smem, size = 0x4, offset = 0x4, fixed_abs, tag = 'smem constant byte address 0x4 - core index']
  #allocation1 [shape = 'u32[144,128]{1,0:T(1,128)}', space=vmem, size = 0x12000, scoped, tag = 'internal scratch']
  %s0 = inlined_call_operand.vmem [shape: f32[8,32], index: 0, kind: input, shape index: {}]
  %s1 = inlined_call_operand.vmem [shape: f32[32,2], index: 1, kind: input, shape index: {}]
  %s2 = inlined_call_operand.vmem [shape: f32[1,2], index: 2, kind: input, shape index: {}]
  %s3 = inlined_call_operand.vmem [shape: f32[8,2], index: 3, kind: output, shape index: {}]
  %s4 = sld [smem:[#allocation0]]
  $region22: #{bnn_forward.1} parent=0
    _
  %s6 = ssub.s32 1, %s4
  %s7 = scalar_select 0, %s6, %s4
  // Predicated region
  $region2: #{bnn_forward.1} parent=0 // pred_check
    _
  $region3: #{bnn_forward.1} parent=0 // pred_check_branch
    %9 = sbr.rel (0) target = $region5
  $region4: #{bnn_forward.1} parent=0 // pred_region
    _
  $region5: #{bnn_forward.1} parent=0 // pred_fallthru
    _
  // Predicated region
  $region6: #{bnn_forward.1} parent=0 // pred_check
    _
  $region7: #{bnn_forward.1} parent=0 // pred_check_branch
    %11 = sbr.rel (0) target = $region9
  $region8: #{bnn_forward.1} parent=0 // pred_region
    _
  $region9: #{bnn_forward.1} parent=0 // pred_fallthru
    _
  // Predicated region
  $region10: #{bnn_forward.1} parent=0 // pred_check
    _
  $region11: #{bnn_forward.1} parent=0 // pred_check_branch
    %13 = sbr.rel (0) target = $region13
  $region12: #{bnn_forward.1} parent=0 // pred_region
    _
  $region13: #{bnn_forward.1} parent=0 // pred_fallthru
    _
  %v14 = vld [vmem:[%s0] sm:$0xff]
  %v15 = vld [vmem:[%s1] sm:$0xff]
  %v16 = vld [vmem:[%s1 + $0x8] sm:$0xff]
  %v17 = vld [vmem:[%s1 + $0x10] sm:$0xff]
  %v18 = vld [vmem:[%s1 + $0x18] sm:$0xff]
  %v19 = vld [vmem:[%s2] sm:$0x1]
  %v21 = vlaneseq
  %v22 = vshrl.u32 %v21, 7
  %v23 = vsub.s32 0, %v22
  %v24 = vrot.slane %v19, %v23
  %vm26 = vcmask 261120
  %v28 = vsel %vm26, %v14, 0
  %30 = vmatprep.subr.mxu0 0.0
  %31 = vmatpush1.msra.mxu0 %v15
  %32 = vmatprep.subr.mxu0 0.0
  %33 = vmatpush1.msra.mxu0 %v16
  %34 = vmatprep.subr.mxu0 0.0
  %35 = vmatpush1.msra.mxu0 %v17
  %36 = vmatprep.subr.mxu0 0.0
  %37 = vmatpush1.msra.mxu0 %v18
  %38 = vmatprep.subr.mxu0 0.0
  %39 = vmatpush1.msra.mxu0 0.0
  %40 = vmatprep.subr.mxu0 0.0
  %41 = vmatpush1.msra.mxu0 0.0
  %42 = vmatprep.subr.mxu0 0.0
  %43 = vmatpush1.msra.mxu0 0.0
  %44 = vmatprep.subr.mxu0 0.0
  %45 = vmatpush1.msra.mxu0 0.0
  %46 = vmatprep.subr.mxu0 0.0
  %47 = vmatpush1.msra.mxu0 0.0
  %48 = vmatprep.subr.mxu0 0.0
  %49 = vmatpush1.msra.mxu0 0.0
  %50 = vmatprep.subr.mxu0 0.0
  %51 = vmatpush1.msra.mxu0 0.0
  %52 = vmatprep.subr.mxu0 0.0
  %53 = vmatpush1.msra.mxu0 0.0
  %54 = vmatprep.subr.mxu0 0.0
  %55 = vmatpush1.msra.mxu0 0.0
  %56 = vmatprep.subr.mxu0 0.0
  %57 = vmatpush1.msra.mxu0 0.0
  %58 = vmatprep.subr.mxu0 0.0
  %59 = vmatpush1.msra.mxu0 0.0
  %60 = vmatprep.subr.mxu0 0.0
  %61 = vmatpush1.msra.mxu0 0.0
  %62 = vmatprep.subr.mxu0 0.0
  %63 = vmatpush1.msra.mxu0 0.0
  %64 = vmatprep.subr.mxu0 0.0
  %65 = vmatpush1.msra.mxu0 0.0
  %66 = vmatprep.subr.mxu0 0.0
  %67 = vmatpush1.msra.mxu0 0.0
  %68 = vmatprep.subr.mxu0 0.0
  %69 = vmatpush1.msra.mxu0 0.0
  %70 = vmatprep.subr.mxu0 0.0
  %71 = vmatpush1.msra.mxu0 0.0
  %72 = vmatprep.subr.mxu0 0.0
  %73 = vmatpush1.msra.mxu0 0.0
  %74 = vmatprep.subr.mxu0 0.0
  %75 = vmatpush1.msra.mxu0 0.0
  %76 = vmatprep.subr.mxu0 0.0
  %77 = vmatpush1.msra.mxu0 0.0
  %78 = vmatprep.subr.mxu0 0.0
  %79 = vmatpush1.msra.mxu0 0.0
  %80 = vmatprep.subr.mxu0 0.0
  %81 = vmatpush1.msra.mxu0 0.0
  %82 = vmatprep.subr.mxu0 0.0
  %83 = vmatpush1.msra.mxu0 0.0
  %84 = vmatprep.subr.mxu0 0.0
  %85 = vmatpush1.msra.mxu0 0.0
  %86 = vmatprep.subr.mxu0 0.0
  %87 = vmatpush1.msra.mxu0 0.0
  %88 = vmatprep.subr.mxu0 0.0
  %89 = vmatpush1.msra.mxu0 0.0
  %90 = vmatprep.subr.mxu0 0.0
  %91 = vmatpush1.msra.mxu0 0.0
  %92 = vmatprep.subr.mxu0 0.0
  %93 = vmatpush1.msra.mxu0 0.0
  %94 = vmatprep.mubr.f32.mxu0 0.0
  %95 = vmatmul.mubr.f32.gmra.mrb[0].mxu0 %v28
  %v96 = vpop.f32.mrb[0].mxu0
  %v97 = vadd.f32 %v24, %v96
  %v98 = vpop.f32.mrb[0].mxu0
  %99 = vdwg.mxu0
  %vm100 = vcmask 15360
  %101 = vst.msk [vmem:[%s3] sm:$0xff] %vm100, %v97
  // Predicated region
  $region14: #{bnn_forward.1} parent=0 // pred_check
    _
  $region15: #{bnn_forward.1} parent=0 // pred_check_branch
    %103 = sbr.rel (0) target = $region17
  $region16: #{bnn_forward.1} parent=0 // pred_region
    _
  $region17: #{bnn_forward.1} parent=0 // pred_fallthru
    _
  // Predicated region
  $region18: #{bnn_forward.1} parent=0 // pred_check
    _
  $region19: #{bnn_forward.1} parent=0 // pred_check_branch
    %105 = sbr.rel (0) target = $region21
  $region20: #{bnn_forward.1} parent=0 // pred_region
    _
  $region21: #{bnn_forward.1} parent=0 // pred_fallthru
    _

</llo_original>
